<compile_context>
chip_gen: v7x
topology: tpu7x:2x2x1
jax: 0.10.0
libtpu: 0.0.40
codegen_flags: <defaults>
</compile_context>

<pallas_src>
import functools
import math

import jax
import jax.numpy as jnp
from jax.experimental import pallas as pl
from jax.experimental.pallas import tpu as pltpu

_LANES = 128
_ACC_ROWS = 64            # accumulator rows target: (64,128) f32 = 8 vregs


def _round_up(v, m):
    return (v + m - 1) // m * m


def _chip_config():
    """(num_partials, target_tile_rows, vmem_limit_bytes, input_buffers)."""
    try:
        kind = jax.devices()[0].device_kind.lower()
    except Exception:  # pragma: no cover - defensive
        kind = ""
    if "v6" in kind:                           # v6e: 1 TC, 128 MiB VMEM
        return 1, 8192, 64 * 1024 * 1024, 2
    if "v5 lite" in kind or "v5e" in kind:     # v5e: 1 TC, most DMA-bound
        return 1, 4096, 40 * 1024 * 1024, 2
    if "v7" in kind or "7x" in kind:           # v7x: 2 TCs, 64 MiB VMEM/TC
        return 2, 4096, 48 * 1024 * 1024, 3
    # Unknown chip: conservative, previously-validated configuration.
    return 2, 2048, None, 2


def _bce_sum_kernel(x_ref, t_ref, out_ref, *, tile_rows, acc_rows, rows,
                    n_inner, mask_from_tile, mask_needed):
    c = pl.program_id(0)          # partial-sum / TensorCore index
    i = pl.program_id(1)          # reduction step within this partial
    tile_idx = c * n_inner + i
    group = tile_rows // acc_rows

    @pl.when(i == 0)
    def _():
        out_ref[...] = jnp.zeros_like(out_ref)

    def accumulate(masked):
        def body(g, red):
            start = g * acc_rows
            if not isinstance(start, int):
                start = pl.multiple_of(start, acc_rows)
            sl = pl.ds(start, acc_rows)
            p = x_ref[sl, :].astype(jnp.float32)
            t = t_ref[sl, :].astype(jnp.float32)
            # PyTorch binary_cross_entropy clamps each log term at -100.
            log_p = jnp.maximum(jnp.log(p), -100.0)
            log_1mp = jnp.maximum(jnp.log(1.0 - p), -100.0)
            # -(per-element BCE): log(1-p) + t*(log p - log(1-p));
            # negated once in the wrapper (folded into the final divide).
            contrib = log_1mp + t * (log_p - log_1mp)
            if masked:
                row = (tile_idx * tile_rows + start
                       + jax.lax.broadcasted_iota(
                           jnp.int32, (acc_rows, _LANES), 0))
                # Must stay a select (not multiply-by-mask): garbage rows in a
                # partial / overhang block may hold NaN/Inf after the log.
                contrib = jnp.where(row < rows, contrib, 0.0)
            return red + contrib

        init = jnp.zeros((acc_rows, _LANES), jnp.float32)
        if group == 1:
            red = body(0, init)
        else:
            red = jax.lax.fori_loop(0, group, body, init)
        out_ref[...] += red

    if mask_needed:
        # Hot path: full interior tiles, no iota/compare/select.
        @pl.when(tile_idx < mask_from_tile)
        def _():
            accumulate(False)

        # Cold path: partial last tile and clamped overhang grid steps.
        @pl.when(tile_idx >= mask_from_tile)
        def _():
            accumulate(True)
    else:
        accumulate(False)

    # NOTE: the reference module also computes dice_loss (intersection etc.)
    # but returns only the BCE term, so that dead work is intentionally omitted.


def dice_bce_loss(inputs, targets, smooth=1.0):
    """Returns scalar mean BCE (matching DiceBCELoss.forward)."""
    n = inputs.size
    assert targets.size == n and n > 0
    del smooth  # dice_loss in the reference never affects the returned value

    num_partials, target_rows, vmem_limit, num_bufs = _chip_config()

    x = inputs.reshape(-1)
    t = targets.reshape(-1)
    # Keep narrow float dtypes narrow for the DMA; upcast inside the kernel.
    if x.dtype not in (jnp.float32, jnp.bfloat16, jnp.float16):
        x = x.astype(jnp.float32)
    if t.dtype not in (jnp.float32, jnp.bfloat16, jnp.float16):
        t = t.astype(jnp.float32)

    # Lane-dense layout (rows, 128).  Aligned n (common case): free reshape.
    pad = (-n) % _LANES
    if pad:
        # TODO(synk): avoid this extra HBM pass for unaligned n by using 1-D
        # blocks + an in-kernel element-level tail mask (needs a lane reshape).
        x = jnp.concatenate([x, jnp.zeros((pad,), x.dtype)])
        t = jnp.concatenate([t, jnp.zeros((pad,), t.dtype)])
    rows = (n + pad) // _LANES
    x2 = x.reshape(rows, _LANES)
    t2 = t.reshape(rows, _LANES)

    # Tile: multiple of 16 rows (bf16 sublane packing), capped per chip.
    tile_rows = min(target_rows, _round_up(rows, 16))
    acc_rows = math.gcd(tile_rows, _ACC_ROWS)     # divides tile_rows, >=16
    n_tiles = pl.cdiv(rows, tile_rows)
    n_inner = pl.cdiv(n_tiles, num_partials)

    # Tail masking applies only to the (possibly partial) last real tile and
    # to overhang grid steps whose input index was clamped.
    mask_from_tile = n_tiles - 1 if rows % tile_rows else n_tiles
    mask_needed = mask_from_tile < num_partials * n_inner

    def in_index(c, i):
        # Clamp so overhang steps re-read the last valid tile; their
        # contribution is zeroed by the in-kernel row mask.
        return (jnp.minimum(c * n_inner + i, n_tiles - 1), 0)

    if num_bufs != 2:
        in_spec = pl.BlockSpec((tile_rows, _LANES), in_index,
                               pipeline_mode=pl.Buffered(num_bufs))
    else:
        in_spec = pl.BlockSpec((tile_rows, _LANES), in_index)

    kernel = functools.partial(
        _bce_sum_kernel, tile_rows=tile_rows, acc_rows=acc_rows, rows=rows,
        n_inner=n_inner, mask_from_tile=mask_from_tile,
        mask_needed=mask_needed)

    compiler_kwargs = dict(dimension_semantics=("parallel", "arbitrary"))
    if vmem_limit is not None:
        compiler_kwargs["vmem_limit_bytes"] = vmem_limit

    out_bytes = num_partials * acc_rows * _LANES * 4
    partial_sums = pl.pallas_call(
        kernel,
        out_shape=jax.ShapeDtypeStruct(
            (num_partials, acc_rows, _LANES), jnp.float32),
        grid_spec=pltpu.PrefetchScalarGridSpec(
            num_scalar_prefetch=0,
            grid=(num_partials, n_inner),
            in_specs=[in_spec, in_spec],
            out_specs=pl.BlockSpec(
                (None, acc_rows, _LANES), lambda c, i: (c, 0, 0)),
        ),
        compiler_params=pltpu.CompilerParams(**compiler_kwargs),
        cost_estimate=pl.CostEstimate(
            flops=6 * n,
            transcendentals=2 * n,
            bytes_accessed=int(x2.nbytes) + int(t2.nbytes) + out_bytes,
        ),
    )(x2, t2)

    # Tiny final reduction (<= 64 KiB of partial sums); the single negate is
    # folded into the mean divide.
    return jnp.sum(partial_sums) * (-1.0 / n)


def _reference(inputs, targets):
    p = inputs.reshape(-1).astype(jnp.float32)
    t = targets.reshape(-1).astype(jnp.float32)
    log_p = jnp.maximum(jnp.log(p), -100.0)
    log_1mp = jnp.maximum(jnp.log(1.0 - p), -100.0)
    return jnp.mean(-(t * log_p + (1.0 - t) * log_1mp))


if __name__ == "__main__":
    key = jax.random.PRNGKey(0)
    k1, k2 = jax.random.split(key)

    # NCHW: batch=2, channels=4, spatial=16x16  (n = 2048, lane-aligned)
    shape = (2, 4, 16, 16)
    inputs = jax.nn.sigmoid(jax.random.normal(k1, shape, jnp.float32))
    targets = (jax.random.uniform(k2, shape) > 0.5).astype(jnp.float32)

    loss = jax.block_until_ready(dice_bce_loss(inputs, targets, smooth=1.0))
    ref = _reference(inputs, targets)
    assert jnp.allclose(loss, ref, rtol=1e-5, atol=1e-6), (loss, ref)

    # Unaligned element count exercises the padded / masked-tail path.
    k3, k4 = jax.random.split(k2)
    shape2 = (3, 5, 7, 11)   # n = 1155, not a multiple of 128
    inputs2 = jax.nn.sigmoid(jax.random.normal(k3, shape2, jnp.float32))
    targets2 = (jax.random.uniform(k4, shape2) > 0.5).astype(jnp.float32)
    loss2 = jax.block_until_ready(dice_bce_loss(inputs2, targets2))
    ref2 = _reference(inputs2, targets2)
    assert jnp.allclose(loss2, ref2, rtol=1e-5, atol=1e-6), (loss2, ref2)

    print("KERNEL_OK")
</pallas_src>

<mosaic_0001>
module attributes {stable_mosaic.version = 11 : i64} {
  func.func @_bce_sum_kernel(%arg0: i32, %arg1: i32, %arg2: memref<16x128xf32, #tpu.memory_space<vmem>>, %arg3: memref<16x128xf32, #tpu.memory_space<vmem>>, %arg4: memref<1x16x128xf32, #tpu.memory_space<vmem>>) attributes {dimension_semantics = [#tpu.dimension_semantics<parallel>, #tpu.dimension_semantics<arbitrary>], iteration_bounds = array<i64: 2, 1>, scalar_prefetch = 0 : i64, scratch_operands = 0 : i64, tpu.core_type = #tpu.core_type<tc>, window_params = [{transform_indices = @transform_0, window_bounds = array<i64: 16, 128>}, {transform_indices = @transform_1, window_bounds = array<i64: 16, 128>}, {transform_indices = @transform_2, window_bounds = array<i64: 1, 16, 128>}]} {
    %c1_i32 = arith.constant 1 : i32
    %0 = arith.muli %arg0, %c1_i32 : i32
    %1 = arith.addi %0, %arg1 : i32
    %c0_i32 = arith.constant 0 : i32
    %2 = arith.cmpi eq, %arg1, %c0_i32 : i32
    %3 = arith.extui %2 : i1 to i32
    %c0_i32_0 = arith.constant 0 : i32
    %4 = arith.cmpi ne, %3, %c0_i32_0 : i32
    scf.if %4 {
      %cst = arith.constant 0.000000e+00 : f32
      %11 = vector.broadcast %cst : f32 to vector<16x128xf32>
      %c0 = arith.constant 0 : index
      %c0_5 = arith.constant 0 : index
      %c0_6 = arith.constant 0 : index
      %12 = vector.load %arg4[%c0, %c0_5, %c0_6] : memref<1x16x128xf32, #tpu.memory_space<vmem>>, vector<1x16x128xf32>
      %13 = vector.shape_cast %12 : vector<1x16x128xf32> to vector<16x128xf32>
      %14 = vector.shape_cast %11 : vector<16x128xf32> to vector<1x16x128xf32>
      tpu.vector_store %arg4[%c0, %c0_5, %c0_6], %14 {strides = array<i32>} : memref<1x16x128xf32, #tpu.memory_space<vmem>>, vector<1x16x128xf32>,
    } else {
    }
    %c1_i32_1 = arith.constant 1 : i32
    %5 = arith.cmpi slt, %1, %c1_i32_1 : i32
    %6 = arith.extui %5 : i1 to i32
    %c0_i32_2 = arith.constant 0 : i32
    %7 = arith.cmpi ne, %6, %c0_i32_2 : i32
    scf.if %7 {
      %cst = arith.constant 0.000000e+00 : f32
      %11 = vector.broadcast %cst : f32 to vector<16x128xf32>
      %c0 = arith.constant 0 : index
      %c0_5 = arith.constant 0 : index
      %12 = vector.load %arg2[%c0, %c0_5] : memref<16x128xf32, #tpu.memory_space<vmem>>, vector<16x128xf32>
      %c0_6 = arith.constant 0 : index
      %c0_7 = arith.constant 0 : index
      %13 = vector.load %arg3[%c0_6, %c0_7] : memref<16x128xf32, #tpu.memory_space<vmem>>, vector<16x128xf32>
      %14 = math.log %12 : vector<16x128xf32>
      %cst_8 = arith.constant -1.000000e+02 : f32
      %15 = vector.broadcast %cst_8 : f32 to vector<16x128xf32>
      %16 = arith.maximumf %14, %15 : vector<16x128xf32>
      %cst_9 = arith.constant 1.000000e+00 : f32
      %17 = vector.broadcast %cst_9 : f32 to vector<16x128xf32>
      %18 = arith.subf %17, %12 : vector<16x128xf32>
      %19 = math.log %18 : vector<16x128xf32>
      %cst_10 = arith.constant -1.000000e+02 : f32
      %20 = vector.broadcast %cst_10 : f32 to vector<16x128xf32>
      %21 = arith.maximumf %19, %20 : vector<16x128xf32>
      %22 = arith.subf %16, %21 : vector<16x128xf32>
      %23 = arith.mulf %13, %22 : vector<16x128xf32>
      %24 = arith.addf %21, %23 : vector<16x128xf32>
      %25 = arith.addf %11, %24 : vector<16x128xf32>
      %c0_11 = arith.constant 0 : index
      %c0_12 = arith.constant 0 : index
      %c0_13 = arith.constant 0 : index
      %26 = vector.load %arg4[%c0_11, %c0_12, %c0_13] : memref<1x16x128xf32, #tpu.memory_space<vmem>>, vector<1x16x128xf32>
      %27 = vector.shape_cast %26 : vector<1x16x128xf32> to vector<16x128xf32>
      %28 = arith.addf %27, %25 : vector<16x128xf32>
      %c0_14 = arith.constant 0 : index
      %c0_15 = arith.constant 0 : index
      %c0_16 = arith.constant 0 : index
      %29 = vector.load %arg4[%c0_14, %c0_15, %c0_16] : memref<1x16x128xf32, #tpu.memory_space<vmem>>, vector<1x16x128xf32>
      %30 = vector.shape_cast %29 : vector<1x16x128xf32> to vector<16x128xf32>
      %31 = vector.shape_cast %28 : vector<16x128xf32> to vector<1x16x128xf32>
      tpu.vector_store %arg4[%c0_14, %c0_15, %c0_16], %31 {strides = array<i32>} : memref<1x16x128xf32, #tpu.memory_space<vmem>>, vector<1x16x128xf32>,
    } else {
    }
    %c1_i32_3 = arith.constant 1 : i32
    %8 = arith.cmpi sge, %1, %c1_i32_3 : i32
    %9 = arith.extui %8 : i1 to i32
    %c0_i32_4 = arith.constant 0 : i32
    %10 = arith.cmpi ne, %9, %c0_i32_4 : i32
    scf.if %10 {
      %cst = arith.constant 0.000000e+00 : f32
      %11 = vector.broadcast %cst : f32 to vector<16x128xf32>
      %c0 = arith.constant 0 : index
      %c0_5 = arith.constant 0 : index
      %12 = vector.load %arg2[%c0, %c0_5] : memref<16x128xf32, #tpu.memory_space<vmem>>, vector<16x128xf32>
      %c0_6 = arith.constant 0 : index
      %c0_7 = arith.constant 0 : index
      %13 = vector.load %arg3[%c0_6, %c0_7] : memref<16x128xf32, #tpu.memory_space<vmem>>, vector<16x128xf32>
      %14 = math.log %12 : vector<16x128xf32>
      %cst_8 = arith.constant -1.000000e+02 : f32
      %15 = vector.broadcast %cst_8 : f32 to vector<16x128xf32>
      %16 = arith.maximumf %14, %15 : vector<16x128xf32>
      %cst_9 = arith.constant 1.000000e+00 : f32
      %17 = vector.broadcast %cst_9 : f32 to vector<16x128xf32>
      %18 = arith.subf %17, %12 : vector<16x128xf32>
      %19 = math.log %18 : vector<16x128xf32>
      %cst_10 = arith.constant -1.000000e+02 : f32
      %20 = vector.broadcast %cst_10 : f32 to vector<16x128xf32>
      %21 = arith.maximumf %19, %20 : vector<16x128xf32>
      %22 = arith.subf %16, %21 : vector<16x128xf32>
      %23 = arith.mulf %13, %22 : vector<16x128xf32>
      %24 = arith.addf %21, %23 : vector<16x128xf32>
      %c16_i32 = arith.constant 16 : i32
      %25 = arith.muli %1, %c16_i32 : i32
      %c0_i32_11 = arith.constant 0 : i32
      %26 = arith.addi %25, %c0_i32_11 : i32
      %27 = tpu.iota {dimensions = array<i32: 0>} : vector<16x128xi32>
      %28 = vector.broadcast %26 : i32 to vector<16x128xi32>
      %29 = arith.addi %28, %27 : vector<16x128xi32>
      %c16_i32_12 = arith.constant 16 : i32
      %30 = vector.broadcast %c16_i32_12 : i32 to vector<16x128xi32>
      %31 = arith.cmpi slt, %29, %30 : vector<16x128xi32>
      %cst_13 = arith.constant 0.000000e+00 : f32
      %32 = vector.broadcast %cst_13 : f32 to vector<16x128xf32>
      %33 = arith.select %31, %24, %32 : vector<16x128xi1>, vector<16x128xf32>
      %34 = arith.addf %11, %33 : vector<16x128xf32>
      %c0_14 = arith.constant 0 : index
      %c0_15 = arith.constant 0 : index
      %c0_16 = arith.constant 0 : index
      %35 = vector.load %arg4[%c0_14, %c0_15, %c0_16] : memref<1x16x128xf32, #tpu.memory_space<vmem>>, vector<1x16x128xf32>
      %36 = vector.shape_cast %35 : vector<1x16x128xf32> to vector<16x128xf32>
      %37 = arith.addf %36, %34 : vector<16x128xf32>
      %c0_17 = arith.constant 0 : index
      %c0_18 = arith.constant 0 : index
      %c0_19 = arith.constant 0 : index
      %38 = vector.load %arg4[%c0_17, %c0_18, %c0_19] : memref<1x16x128xf32, #tpu.memory_space<vmem>>, vector<1x16x128xf32>
      %39 = vector.shape_cast %38 : vector<1x16x128xf32> to vector<16x128xf32>
      %40 = vector.shape_cast %37 : vector<16x128xf32> to vector<1x16x128xf32>
      tpu.vector_store %arg4[%c0_17, %c0_18, %c0_19], %40 {strides = array<i32>} : memref<1x16x128xf32, #tpu.memory_space<vmem>>, vector<1x16x128xf32>,
    } else {
    }
    return
  }
  func.func @transform_0(%arg0: i32, %arg1: i32) -> (i32, i32) {
    %c1_i32 = arith.constant 1 : i32
    %0 = arith.muli %arg0, %c1_i32 : i32
    %1 = arith.addi %0, %arg1 : i32
    %c0_i32 = arith.constant 0 : i32
    %2 = arith.minsi %1, %c0_i32 : i32
    %c0_i32_0 = arith.constant 0 : i32
    %c0_i32_1 = arith.constant 0 : i32
    return %2, %c0_i32_0 : i32, i32
  }
  func.func @transform_1(%arg0: i32, %arg1: i32) -> (i32, i32) {
    %c1_i32 = arith.constant 1 : i32
    %0 = arith.muli %arg0, %c1_i32 : i32
    %1 = arith.addi %0, %arg1 : i32
    %c0_i32 = arith.constant 0 : i32
    %2 = arith.minsi %1, %c0_i32 : i32
    %c0_i32_0 = arith.constant 0 : i32
    %c0_i32_1 = arith.constant 0 : i32
    return %2, %c0_i32_0 : i32, i32
  }
  func.func @transform_2(%arg0: i32, %arg1: i32) -> (i32, i32, i32) {
    %c0_i32 = arith.constant 0 : i32
    %c0_i32_0 = arith.constant 0 : i32
    %c0_i32_1 = arith.constant 0 : i32
    return %arg0, %c0_i32, %c0_i32_0 : i32, i32, i32
  }
}

</mosaic_0001>

<llo_original>
// kernel: tpu_custom_call.1
$region0: #{tpu_custom_call.1}
  #allocation0 [shape = 'u32[]', space=smem, size = 0x4, offset = 0x4, fixed_abs, tag = 'smem constant byte address 0x4 - core index']
  #allocation1 [shape = 'u32[144,128]{1,0:T(1,128)}', space=vmem, size = 0x12000, scoped, tag = 'internal scratch']
  %s0 = inlined_call_operand.hbm [shape: f32[16,128], index: 0, kind: input, shape index: {}]
  %s1 = inlined_call_operand.hbm [shape: f32[16,128], index: 1, kind: input, shape index: {}]
  %s2 = inlined_call_operand.hbm [shape: f32[2,16,128], index: 2, kind: output, shape index: {}]
  %s3 = sld [smem:[#allocation0]]
  $region61: #{tpu_custom_call.1} parent=0
    _
  %s5 = ssub.s32 1, %s3
  %s6 = scalar_select 0, %s5, %s3
  $region1: #{tpu_custom_call.1} parent=0
    #allocation2 [shape = 'u8[16384]{0}', space=vmem, size = 0x4000, scoped, tag = 'input window, operand 0']
    #allocation3 [shape = 's32[2]{0}', space=sflag, size = 0x8, scoped, tag = 'scoped memory for tpu_custom_call.1']
    #allocation4 [shape = 's32[2]{0}', space=sflag, size = 0x8, scoped, tag = 'scoped memory for tpu_custom_call.1']
    #allocation5 [shape = 'u8[16384]{0}', space=vmem, size = 0x4000, scoped, tag = 'input window, operand 1']
    #allocation6 [shape = 's32[2]{0}', space=sflag, size = 0x8, scoped, tag = 'scoped memory for tpu_custom_call.1']
    #allocation7 [shape = 'u8[16384]{0}', space=vmem, size = 0x4000, scoped, tag = 'output window, operand 0']
    %7 = vsyncpa [#allocation3], 0
    %s8 = scalar_lea.sflag [#allocation3], 1
    %9 = vsyncpa %s8, 0
    %10 = vsyncpa [#allocation6], 0
    %s11 = scalar_lea.sflag [#allocation6], 1
    %12 = vsyncpa %s11, 0
    %13 = vsyncpa [#allocation4], 0
    %s14 = scalar_lea.sflag [#allocation4], 1
    %15 = vsyncpa %s14, 0
    loop: start=0, step=1, limit=4
    $region2: #{tpu_custom_call.1} parent=1 // loop_pre_header
      _
    $region3: #{tpu_custom_call.1} parent=1 // loop_header
      %s17 = sphi 0, %s21
      %p18 = scmp.ge.s32.totalorder %s17, 4
      %s24 = sphi 0, %s36
      %s25 = sphi 0, %s32
      %s26 = sphi 0, %s24
      %s27 = sphi 0, %s25
      %s28 = sphi 0, %s26
      %s29 = sphi 0, %s27
      %s45 = sphi 0, %s47
      %s48 = sphi 0, %s45
      %s49 = sphi 0, %s48
      %s65 = sphi 0, %s49
      %s77 = sphi 0, %s79
      %s80 = sphi 0, %s77
      %s81 = sphi 0, %s80
      %s97 = sphi 0, %s81
      %s103 = sphi 0, %s105
      %s106 = sphi 0, %s103
      %s107 = sphi 0, %s106
      %s123 = sphi 0, %s107
    $region4: #{tpu_custom_call.1} parent=1 // loop_header_branch
      %20 = sbr.rel (%p18) target = $region8
    $region5: #{tpu_custom_call.1} parent=1 // loop_body
      %s22 = ssub.s32 %s17, 1
      %s23 = ssub.s32 %s17, 2
      %s30 = sadd.s32 1, %s25
      %p31 = scmp.ge.s32.totalorder %s30, 1
      %s32 = scalar_select %p31, 0, %s30
      %s33 = sadd.s32 1, %s24
      %s34 = scalar_select %p31, %s33, %s24
      %p35 = scmp.ge.s32.totalorder %s34, 2
      %s36 = scalar_select %p35, 0, %s34
      %s37 = sadd.s32 %s24, %s25
      %p38 = scmp.lt.s32.totalorder %s37, 0
      %s39 = scalar_select %p38, %s37, 0
      %s40 = sadd.s32 %s36, %s32
      %p41 = scmp.lt.s32.totalorder %s40, 0
      %s42 = scalar_select %p41, %s40, 0
      %s43 = ssub.s32 %s39, %s42
      %p44 = scmp.eq.s32.totalorder %s43, 0
      %s46 = sadd.s32 %s45, 1
      %s47 = scalar_select %p44, %s45, %s46
      %p50 = pneg %p44
      %p51 = scmp.eq.s32.totalorder %s17, 1
      %p52 = por %p50, %p51
      %p53 = scmp.ne.s32.totalorder %s45, %s48
      %p54 = scmp.eq.s32.totalorder %s17, 0
      %p55 = por %p53, %p54
      %p56 = scmp.ne.s32.totalorder %s45, %s48
      %p57 = scmp.eq.s32.totalorder %s22, 1
      %p58 = por %p56, %p57
      %p59 = scmp.ne.s32.totalorder %s48, %s49
      %p60 = scmp.eq.s32.totalorder %s22, 0
      %p61 = por %p59, %p60
      %p62 = scmp.ne.s32.totalorder %s48, %s49
      %p63 = scmp.eq.s32.totalorder %s23, 1
      %p64 = por %p62, %p63
      %p66 = scmp.ne.s32.totalorder %s49, %s65
      %p67 = scmp.eq.s32.totalorder %s23, 0
      %p68 = por %p66, %p67
      %s69 = sadd.s32 %s24, %s25
      %p70 = scmp.lt.s32.totalorder %s69, 0
      %s71 = scalar_select %p70, %s69, 0
      %s72 = sadd.s32 %s36, %s32
      %p73 = scmp.lt.s32.totalorder %s72, 0
      %s74 = scalar_select %p73, %s72, 0
      %s75 = ssub.s32 %s71, %s74
      %p76 = scmp.eq.s32.totalorder %s75, 0
      %s78 = sadd.s32 %s77, 1
      %s79 = scalar_select %p76, %s77, %s78
      %p82 = pneg %p76
      %p83 = scmp.eq.s32.totalorder %s17, 1
      %p84 = por %p82, %p83
      %p85 = scmp.ne.s32.totalorder %s77, %s80
      %p86 = scmp.eq.s32.totalorder %s17, 0
      %p87 = por %p85, %p86
      %p88 = scmp.ne.s32.totalorder %s77, %s80
      %p89 = scmp.eq.s32.totalorder %s22, 1
      %p90 = por %p88, %p89
      %p91 = scmp.ne.s32.totalorder %s80, %s81
      %p92 = scmp.eq.s32.totalorder %s22, 0
      %p93 = por %p91, %p92
      %p94 = scmp.ne.s32.totalorder %s80, %s81
      %p95 = scmp.eq.s32.totalorder %s23, 1
      %p96 = por %p94, %p95
      %p98 = scmp.ne.s32.totalorder %s81, %s97
      %p99 = scmp.eq.s32.totalorder %s23, 0
      %p100 = por %p98, %p99
      %s101 = ssub.s32 %s24, %s36
      %p102 = scmp.eq.s32.totalorder %s101, 0
      %s104 = sadd.s32 %s103, 1
      %s105 = scalar_select %p102, %s103, %s104
      %p108 = pneg %p102
      %p109 = scmp.eq.s32.totalorder %s17, 1
      %p110 = por %p108, %p109
      %p111 = scmp.ne.s32.totalorder %s103, %s106
      %p112 = scmp.eq.s32.totalorder %s17, 0
      %p113 = por %p111, %p112
      %p114 = scmp.ne.s32.totalorder %s103, %s106
      %p115 = scmp.eq.s32.totalorder %s22, 1
      %p116 = por %p114, %p115
      %p117 = scmp.ne.s32.totalorder %s106, %s107
      %p118 = scmp.eq.s32.totalorder %s22, 0
      %p119 = por %p117, %p118
      %p120 = scmp.ne.s32.totalorder %s106, %s107
      %p121 = scmp.eq.s32.totalorder %s23, 1
      %p122 = por %p120, %p121
      %p124 = scmp.ne.s32.totalorder %s107, %s123
      %p125 = scmp.eq.s32.totalorder %s23, 0
      %p126 = por %p124, %p125
      %p127 = scmp.le.s32.totalorder 1, %s17
      %p128 = scmp.lt.s32.totalorder %s17, 3
      %p129 = pnand %p127, %p128
      %p130 = pneg %p129
      // Predicated region
      $region9: #{tpu_custom_call.1} parent=5 // pred_check
        _
      $region10: #{tpu_custom_call.1} parent=5 // pred_check_branch
        %132 = sbr.rel (%p129) target = $region12
      $region11: #{tpu_custom_call.1} parent=5 // pred_region
        %s133 = ssub.s32 %s17, 1
      $region12: #{tpu_custom_call.1} parent=5 // pred_fallthru
        _
      %p134 = scmp.lt.s32.totalorder %s17, 2
      // Predicated region
      $region13: #{tpu_custom_call.1} parent=5 // pred_check
        %p135 = pneg %p134
      $region14: #{tpu_custom_call.1} parent=5 // pred_check_branch
        %137 = sbr.rel (%p135) target = $region16
      $region15: #{tpu_custom_call.1} parent=5 // pred_region
        // Predicated region
        $region17: #{tpu_custom_call.1} parent=15 // pred_check
          %p138 = pneg %p55
        $region18: #{tpu_custom_call.1} parent=15 // pred_check_branch
          %140 = sbr.rel (%p138) target = $region20
        $region19: #{tpu_custom_call.1} parent=15 // pred_region
          %s141 = sand.u32 %s45, 1
          %s142 = scalar_lea.sflag [#allocation3], %s141
          %s143 = sand.u32 %s45, 1
          %s144 = smul.addr %s143, 16
          %s145 = scalar_lea.vmem [#allocation2], %s144
          %s146 = sadd.s32 %s24, %s25
          %p147 = scmp.lt.s32.totalorder %s146, 0
          %s148 = scalar_select %p147, %s146, 0
          %s149 = smul.u32 2, %s148
          %s151 = ssub.s32 256, 256
          %152 = vsyncadd %s142, %s151
          %s153 = smul.addr %s149, 128
          %s154 = scalar_lea.hbm %s0, %s153
          %s155 = sshll.u32 %s145, 4
          %s156 = int_to_ptr.vmem [resolvable:$true] %s155
          %161 = dma.hbm_to_vmem [thread:$0]  %s154, 256, %s156, %s142, 128, 128, 8
        $region20: #{tpu_custom_call.1} parent=15 // pred_fallthru
          _
        // Predicated region
        $region21: #{tpu_custom_call.1} parent=15 // pred_check
          %p162 = pneg %p87
        $region22: #{tpu_custom_call.1} parent=15 // pred_check_branch
          %164 = sbr.rel (%p162) target = $region24
        $region23: #{tpu_custom_call.1} parent=15 // pred_region
          %s165 = sand.u32 %s77, 1
          %s166 = scalar_lea.sflag [#allocation6], %s165
          %s167 = sand.u32 %s77, 1
          %s168 = smul.addr %s167, 16
          %s169 = scalar_lea.vmem [#allocation5], %s168
          %s170 = sadd.s32 %s24, %s25
          %p171 = scmp.lt.s32.totalorder %s170, 0
          %s172 = scalar_select %p171, %s170, 0
          %s173 = smul.u32 2, %s172
          %s175 = ssub.s32 256, 256
          %176 = vsyncadd %s166, %s175
          %s177 = smul.addr %s173, 128
          %s178 = scalar_lea.hbm %s1, %s177
          %s179 = sshll.u32 %s169, 4
          %s180 = int_to_ptr.vmem [resolvable:$true] %s179
          %185 = dma.hbm_to_vmem [thread:$0]  %s178, 256, %s180, %s166, 128, 128, 8
        $region24: #{tpu_custom_call.1} parent=15 // pred_fallthru
          _
      $region16: #{tpu_custom_call.1} parent=5 // pred_fallthru
        _
      %p186 = scmp.le.s32.totalorder 1, %s17
      %p187 = scmp.lt.s32.totalorder %s17, 3
      %p188 = pnand %p186, %p187
      %p189 = pneg %p188
      // Predicated region
      $region25: #{tpu_custom_call.1} parent=5 // pred_check
        _
      $region26: #{tpu_custom_call.1} parent=5 // pred_check_branch
        %191 = sbr.rel (%p188) target = $region28
      $region27: #{tpu_custom_call.1} parent=5 // pred_region
        %s192 = ssub.s32 %s17, 1
        %s193 = sand.u32 %s48, 1
        %s194 = scalar_lea.sflag [#allocation3], %s193
        %s195 = sand.u32 %s48, 1
        %s196 = smul.addr %s195, 16
        %s197 = scalar_lea.vmem [#allocation2], %s196
        // Predicated region
        $region29: #{tpu_custom_call.1} parent=27 // pred_check
          %p198 = pneg %p61
        $region30: #{tpu_custom_call.1} parent=27 // pred_check_branch
          %200 = sbr.rel (%p198) target = $region32
        $region31: #{tpu_custom_call.1} parent=27 // pred_region
          %201 = dma.done %s194, 256
        $region32: #{tpu_custom_call.1} parent=27 // pred_fallthru
          _
        %s202 = sand.u32 %s80, 1
        %s203 = scalar_lea.sflag [#allocation6], %s202
        %s204 = sand.u32 %s80, 1
        %s205 = smul.addr %s204, 16
        %s206 = scalar_lea.vmem [#allocation5], %s205
        // Predicated region
        $region33: #{tpu_custom_call.1} parent=27 // pred_check
          %p207 = pneg %p93
        $region34: #{tpu_custom_call.1} parent=27 // pred_check_branch
          %209 = sbr.rel (%p207) target = $region36
        $region35: #{tpu_custom_call.1} parent=27 // pred_region
          %210 = dma.done %s203, 256
        $region36: #{tpu_custom_call.1} parent=27 // pred_fallthru
          _
        %s211 = sand.u32 %s48, 1
        %s212 = scalar_lea.sflag [#allocation3], %s211
        %s213 = sand.u32 %s48, 1
        %s214 = smul.addr %s213, 16
        %s215 = scalar_lea.vmem [#allocation2], %s214
        %p216 = pneg %p61
        %p217 = pneg %p58
        %s218 = sand.u32 %s80, 1
        %s219 = scalar_lea.sflag [#allocation6], %s218
        %s220 = sand.u32 %s80, 1
        %s221 = smul.addr %s220, 16
        %s222 = scalar_lea.vmem [#allocation5], %s221
        %p223 = pneg %p93
        %p224 = pneg %p90
        %p225 = pneg %p119
        %p226 = pneg %p116
        %s227 = sand.u32 %s106, 1
        %s228 = scalar_lea.sflag [#allocation4], %s227
        %s229 = sand.u32 %s106, 1
        %s230 = smul.addr %s229, 16
        %s231 = scalar_lea.vmem [#allocation7], %s230
        %s232 = sadd.s32 %s26, %s27
        %p233 = scmp.lt.s32.totalorder %s232, 0
        %s234 = scalar_select %p233, %s232, 0
        %s235 = smul.u32 2, %s234
        %s236 = sadd.s32 %s26, %s27
        %p237 = scmp.lt.s32.totalorder %s236, 0
        %s238 = scalar_select %p237, %s236, 0
        %s239 = smul.u32 2, %s238
        %s240 = sadd.s32 %s26, %s27
        %p241 = scmp.eq.s32.totalorder %s27, 0
        // Predicated region
        $region37: #{tpu_custom_call.1} parent=27 // pred_check
          %p242 = pneg %p241
        $region38: #{tpu_custom_call.1} parent=27 // pred_check_branch
          %244 = sbr.rel (%p242) target = $region40
        $region39: #{tpu_custom_call.1} parent=27 // pred_region
          %245 = vst [vmem:[%s231] sm:$0xff] 0.0
          %246 = vst [vmem:[%s231 + $0x8] sm:$0xff] 0.0
        $region40: #{tpu_custom_call.1} parent=27 // pred_fallthru
          _
        %p247 = scmp.lt.s32.totalorder %s240, 1
        // Predicated region
        $region41: #{tpu_custom_call.1} parent=27 // pred_check
          %p248 = pneg %p247
        $region42: #{tpu_custom_call.1} parent=27 // pred_check_branch
          %250 = sbr.rel (%p248) target = $region44
        $region43: #{tpu_custom_call.1} parent=27 // pred_region
          %v251 = vld [vmem:[%s197] sm:$0xff]
          %v252 = vld [vmem:[%s197 + $0x8] sm:$0xff]
          %v253 = vld [vmem:[%s206] sm:$0xff]
          %v254 = vld [vmem:[%s206 + $0x8] sm:$0xff]
          %v255 = vlog2.pop %v251
          %v256 = vmul.f32 %v255, 0.6931472
          %v257 = vlog2.pop %v252
          %v258 = vmul.f32 %v257, 0.6931472
          %v259 = vmax.f32 %v256, -100.0
          %v260 = vmax.f32 %v258, -100.0
          %v261 = vsub.f32 1.0, %v251
          %v262 = vsub.f32 1.0, %v252
          %v263 = vlog2.pop %v261
          %v264 = vmul.f32 %v263, 0.6931472
          %v265 = vlog2.pop %v262
          %v266 = vmul.f32 %v265, 0.6931472
          %v267 = vmax.f32 %v264, -100.0
          %v268 = vmax.f32 %v266, -100.0
          %v269 = vsub.f32 %v259, %v267
          %v270 = vsub.f32 %v260, %v268
          %v271 = vmul.f32 %v253, %v269
          %v272 = vmul.f32 %v254, %v270
          %v273 = vadd.f32 %v267, %v271
          %v274 = vadd.f32 %v268, %v272
          %v275 = vadd.f32 %v273, 0.0
          %v276 = vadd.f32 %v274, 0.0
          %v277 = vld [vmem:[%s231] sm:$0xff]
          %v278 = vld [vmem:[%s231 + $0x8] sm:$0xff]
          %v279 = vadd.f32 %v277, %v275
          %v280 = vadd.f32 %v278, %v276
          %281 = vst [vmem:[%s231] sm:$0xff] %v279
          %282 = vst [vmem:[%s231 + $0x8] sm:$0xff] %v280
        $region44: #{tpu_custom_call.1} parent=27 // pred_fallthru
          _
        %p283 = scmp.ge.s32.totalorder %s240, 1
        // Predicated region
        $region45: #{tpu_custom_call.1} parent=27 // pred_check
          %p284 = pneg %p283
        $region46: #{tpu_custom_call.1} parent=27 // pred_check_branch
          %286 = sbr.rel (%p284) target = $region48
        $region47: #{tpu_custom_call.1} parent=27 // pred_region
          %v287 = vld [vmem:[%s197] sm:$0xff]
          %v288 = vld [vmem:[%s197 + $0x8] sm:$0xff]
          %v289 = vld [vmem:[%s206] sm:$0xff]
          %v290 = vld [vmem:[%s206 + $0x8] sm:$0xff]
          %v291 = vlog2.pop %v287
          %v292 = vmul.f32 %v291, 0.6931472
          %v293 = vlog2.pop %v288
          %v294 = vmul.f32 %v293, 0.6931472
          %v295 = vmax.f32 %v292, -100.0
          %v296 = vmax.f32 %v294, -100.0
          %v297 = vsub.f32 1.0, %v287
          %v298 = vsub.f32 1.0, %v288
          %v299 = vlog2.pop %v297
          %v300 = vmul.f32 %v299, 0.6931472
          %v301 = vlog2.pop %v298
          %v302 = vmul.f32 %v301, 0.6931472
          %v303 = vmax.f32 %v300, -100.0
          %v304 = vmax.f32 %v302, -100.0
          %v305 = vsub.f32 %v295, %v303
          %v306 = vsub.f32 %v296, %v304
          %v307 = vmul.f32 %v289, %v305
          %v308 = vmul.f32 %v290, %v306
          %v309 = vadd.f32 %v303, %v307
          %v310 = vadd.f32 %v304, %v308
          %s311 = smul.u32 %s240, 16
          %v312 = vlaneseq
          %v313 = vshrl.u32 %v312, 7
          %v314 = vadd.s32 %v313, 8
          %v315 = vstv %s311
          %v316 = vadd.s32 %v315, %v313
          %v317 = vadd.s32 %v315, %v314
          %vm318 = vcmp.lt.s32.totalorder %v316, 16
          %vm319 = vcmp.lt.s32.totalorder %v317, 16
          %v320 = vsel %vm318, %v309, 0.0
          %v321 = vsel %vm319, %v310, 0.0
          %v322 = vadd.f32 %v320, 0.0
          %v323 = vadd.f32 %v321, 0.0
          %v324 = vld [vmem:[%s231] sm:$0xff]
          %v325 = vld [vmem:[%s231 + $0x8] sm:$0xff]
          %v326 = vadd.f32 %v324, %v322
          %v327 = vadd.f32 %v325, %v323
          %328 = vst [vmem:[%s231] sm:$0xff] %v326
          %329 = vst [vmem:[%s231 + $0x8] sm:$0xff] %v327
        $region48: #{tpu_custom_call.1} parent=27 // pred_fallthru
          _
        %s330 = sand.u32 %s106, 1
        %s331 = scalar_lea.sflag [#allocation4], %s330
        %s332 = sand.u32 %s106, 1
        %s333 = smul.addr %s332, 16
        %s334 = scalar_lea.vmem [#allocation7], %s333
        // Predicated region
        $region49: #{tpu_custom_call.1} parent=27 // pred_check
          %p335 = pneg %p116
        $region50: #{tpu_custom_call.1} parent=27 // pred_check_branch
          %337 = sbr.rel (%p335) target = $region52
        $region51: #{tpu_custom_call.1} parent=27 // pred_region
          %s339 = ssub.s32 256, 256
          %340 = vsyncadd %s331, %s339
          %s341 = smul.addr %s26, 2
          %s342 = smul.addr %s341, 128
          %s343 = scalar_lea.hbm %s2, %s342
          %s344 = sshll.u32 %s334, 4
          %s345 = int_to_ptr.vmem [resolvable:$true] %s344
          %350 = dma.vmem_to_hbm [thread:$0]  %s345, 256, %s343, %s331, 128, 128, 8
        $region52: #{tpu_custom_call.1} parent=27 // pred_fallthru
          _
      $region28: #{tpu_custom_call.1} parent=5 // pred_fallthru
        _
      %p351 = scmp.le.s32.totalorder 2, %s17
      // Predicated region
      $region53: #{tpu_custom_call.1} parent=5 // pred_check
        %p352 = pneg %p351
      $region54: #{tpu_custom_call.1} parent=5 // pred_check_branch
        %354 = sbr.rel (%p352) target = $region56
      $region55: #{tpu_custom_call.1} parent=5 // pred_region
        %s355 = ssub.s32 %s17, 2
        // Predicated region
        $region57: #{tpu_custom_call.1} parent=55 // pred_check
          %p356 = pneg %p122
        $region58: #{tpu_custom_call.1} parent=55 // pred_check_branch
          %358 = sbr.rel (%p356) target = $region60
        $region59: #{tpu_custom_call.1} parent=55 // pred_region
          %s359 = sand.u32 %s107, 1
          %s360 = scalar_lea.sflag [#allocation4], %s359
          %s361 = sand.u32 %s107, 1
          %s362 = smul.addr %s361, 16
          %s363 = scalar_lea.vmem [#allocation7], %s362
          %364 = dma.done %s360, 256
        $region60: #{tpu_custom_call.1} parent=55 // pred_fallthru
          _
      $region56: #{tpu_custom_call.1} parent=5 // pred_fallthru
        _
    $region6: #{tpu_custom_call.1} parent=1 // loop_footer
      %s21 = sadd.s32 1, %s17
    $region7: #{tpu_custom_call.1} parent=1 // loop_footer_branch
      %16 = sbr.rel target = $region3
    $region8: #{tpu_custom_call.1} parent=1 // loop_exit
      _
    %365 = vsyncpa [#allocation3], 1
    %s366 = scalar_lea.sflag [#allocation3], 1
    %367 = vsyncpa %s366, 1
    %368 = vsyncpa [#allocation6], 1
    %s369 = scalar_lea.sflag [#allocation6], 1
    %370 = vsyncpa %s369, 1
    %371 = vsyncpa [#allocation4], 1
    %s372 = scalar_lea.sflag [#allocation4], 1
    %373 = vsyncpa %s372, 1

</llo_original>
